<compile_context>
chip_gen: v7x
topology: tpu7x:2x2x1
jax: 0.10.0
libtpu: 0.0.40
codegen_flags: <defaults>
</compile_context>

<pallas_src>
import functools

import jax
import jax.numpy as jnp
from jax.experimental import pallas as pl
from jax.experimental.pallas import tpu as pltpu

_MIB = 1024 * 1024


def _round_up(x, m):
    return ((x + m - 1) // m) * m


def _sublane_multiple(itemsize):
    # f32 -> 8, bf16 -> 16, int8/fp8 -> 32 sublane packing.
    return max(8, 32 // max(1, itemsize))


def _vmem_budget():
    """(streaming working-set budget, vmem_limit_bytes) per TPU generation."""
    try:
        info = pltpu.get_tpu_info()
        phys = int(getattr(info, "vmem_capacity_bytes", 64 * _MIB))
    except Exception:  # pragma: no cover - conservative fallback
        phys = 64 * _MIB
    if phys >= 128 * _MIB:        # v4 / v5e / v6e: 128 MiB physical VMEM
        return 72 * _MIB, 100 * _MIB
    if phys >= 64 * _MIB:         # v7x: 64 MiB per TensorCore
        return 36 * _MIB, 52 * _MIB
    return 16 * _MIB, min(phys * 3 // 4, 32 * _MIB)


def _choose_tile_n(n, c, itemsize, working_budget):
    sub = _sublane_multiple(itemsize)
    c_pad = _round_up(c, 128)
    # VMEM bytes consumed per tile row:
    #   2x double-buffered logits blocks                      : 2 * c_pad * itemsize
    #   2x double-buffered targets blocks (int32, 1 -> 128 ln): 2 * 512
    #   ~5 full-width f32/i32 temporaries in the kernel body  : 5 * c_pad * 4
    #   (tile_n, 128) f32 MXU row-sum result                  : 512
    per_row = 2 * (c_pad * itemsize + 128 * 4) + 5 * c_pad * 4 + 128 * 4
    reserve = c_pad * 128 * 4 if c >= 128 else 0   # ones-matrix for the MXU row-sum
    avail = max(working_budget - reserve, 1 * _MIB)
    tile = avail // per_row
    tile = max(sub, (tile // sub) * sub)
    # Keep >= ~8 grid steps so ("parallel",) splits across both TCs (v7x) and the
    # DMA pipeline has something to overlap; never exceed the (rounded) row count.
    tile = min(tile, max(sub, _round_up(pl.cdiv(n, 8), sub)))
    tile = min(tile, _round_up(n, sub))
    return int(tile)


def _int_pow(x, p):
    """x**p for a static non-negative python int p, via plain VPU multiplies."""
    result = None
    base = x
    while p:
        if p & 1:
            result = base if result is None else result * base
        p >>= 1
        if p:
            base = base * base
    return jnp.ones_like(x) if result is None else result


def _focal_tile_kernel(n_valid_ref, logits_ref, targets_ref, alpha_ref, out_ref, *,
                       gamma):
    # n_valid_ref: (1,)        int32   SMEM (scalar prefetch)
    # logits_ref : (TILE_N, C) native  VMEM
    # targets_ref: (TILE_N, 1) int32   VMEM
    # alpha_ref  : (1, C)      float32 VMEM (resident across tiles)
    # out_ref    : (8, 128)    float32 VMEM (partial sum splatted; read [0,0] outside)
    i = pl.program_id(0)
    tile_n, c = logits_ref.shape

    x = logits_ref[...].astype(jnp.float32)        # cast in VMEM, not in HBM
    t = targets_ref[...]                            # (TILE_N, 1) int32
    a = alpha_ref[...]                              # (1, C) float32

    col = jax.lax.broadcasted_iota(jnp.int32, (tile_n, c), 1)
    mask = col == t                                 # bool one-hot (picked-logit, alpha)

    # numerically stable softmax pieces shared between CE and pt
    m = jnp.max(x, axis=1, keepdims=True)           # (TILE_N, 1)   XLU
    ex = jnp.exp(x - m)                              # (TILE_N, C)   EUP

    if c >= 128:
        # Offload the big cross-lane reduce to the (otherwise idle) MXU.
        ones_mat = jnp.ones((c, 128), jnp.float32)
        sumexp = jnp.dot(ex, ones_mat,
                         preferred_element_type=jnp.float32)[:, 0:1]   # (TILE_N, 1)
    else:
        sumexp = jnp.sum(ex, axis=1, keepdims=True)                     # XLU

    picked = jnp.max(jnp.where(mask, x, -jnp.inf), axis=1, keepdims=True)  # x[i, t_i]
    alpha_t = jnp.sum(jnp.where(mask, a, 0.0), axis=1, keepdims=True)      # alpha[t_i]

    ce = (m - picked) + jnp.log(sumexp)              # cross-entropy per row
    pt = jnp.exp(-ce)                                 # (TILE_N, 1) EUP; no full-tile op

    one_minus_pt = jnp.maximum(1.0 - pt, 0.0)        # clamp (pt can exceed 1 by an ulp)
    if isinstance(gamma, int):
        modulator = _int_pow(one_minus_pt, gamma)    # plain VPU multiply chain
    else:
        safe = jnp.maximum(one_minus_pt, jnp.finfo(jnp.float32).tiny)
        modulator = jnp.where(one_minus_pt > 0.0,
                              jnp.exp(gamma * jnp.log(safe)), 0.0)

    focal = alpha_t * modulator * ce                  # (TILE_N, 1)

    # zero out rows past the true N (ragged last tile / garbage block padding)
    row = i * tile_n + jax.lax.broadcasted_iota(jnp.int32, (tile_n, 1), 0)
    focal = jnp.where(row < n_valid_ref[0], focal, 0.0)

    partial = jnp.sum(focal)
    # lane-dense, unmasked store; the wrapper reads element [0,0] of each block.
    out_ref[...] = jnp.broadcast_to(partial, (8, 128)).astype(jnp.float32)


def _focal_loss_jax(inputs, targets, alpha_vec, gamma):
    """Pure-JAX per-row focal loss (reference / tiny-input / 'none' path)."""
    x = inputs.astype(jnp.float32)
    lse = jax.scipy.special.logsumexp(x, axis=1)
    picked = jnp.take_along_axis(x, targets[:, None].astype(jnp.int32), axis=1)[:, 0]
    ce = lse - picked
    pt = jnp.exp(-ce)
    a = alpha_vec[targets.astype(jnp.int32)]
    return a * (1.0 - pt) ** gamma * ce


def multiclass_focal_loss(inputs, targets, alpha=None, gamma=2,
                          reduction="mean", force_pallas=False, tile_n=None):
    """inputs: (N, C) logits (any float dtype); targets: (N,) int; alpha: (C,) or None."""
    inputs = jnp.asarray(inputs)
    targets = jnp.asarray(targets)
    n, c = inputs.shape
    if alpha is None:
        alpha_vec = jnp.ones((c,), dtype=jnp.float32)
    else:
        alpha_vec = jnp.asarray(alpha, dtype=jnp.float32)

    # Normalize float-but-integral gamma (e.g. 2.0) onto the integer multiply path.
    gf = float(gamma)
    gamma = int(gf) if (gf.is_integer() and gf >= 0) else gf

    if reduction not in ("mean", "sum"):
        # TODO(synk): per-sample ('none') output stays on the fused XLA path;
        # the Pallas kernel only materializes the reduced scalar.
        return _focal_loss_jax(inputs, targets, alpha_vec, gamma)

    # Tiny problems: pallas_call dispatch + per-step overhead dwarfs the work.
    if not force_pallas and n * c < 16 * 1024:
        per_row = _focal_loss_jax(inputs, targets, alpha_vec, gamma)
        return jnp.mean(per_row) if reduction == "mean" else jnp.sum(per_row)

    itemsize = jnp.dtype(inputs.dtype).itemsize
    working_budget, vmem_limit = _vmem_budget()
    if tile_n is None:
        tile_n = _choose_tile_n(n, c, itemsize, working_budget)
    else:
        sub = _sublane_multiple(itemsize)
        tile_n = max(sub, (int(tile_n) // sub) * sub)
        tile_n = min(tile_n, _round_up(n, sub))

    # No wrapper-side padding of the logits: grid = cdiv(N, tile_n) and the ragged
    # last tile is masked inside the kernel (row < n_valid).
    num_tiles = int(pl.cdiv(n, tile_n))
    tgt = targets.astype(jnp.int32).reshape(n, 1)
    alpha2d = alpha_vec.reshape(1, c)
    n_valid = jnp.array([n], dtype=jnp.int32)     # scalar prefetch -> SMEM

    # TODO(synk): for vocabulary-scale C an online (flash-style) logsumexp over
    # C tiles would bound VMEM independent of C; current kernel needs a full row.
    kernel = functools.partial(_focal_tile_kernel, gamma=gamma)

    partials = pl.pallas_call(
        kernel,
        out_shape=jax.ShapeDtypeStruct((num_tiles * 8, 128), jnp.float32),
        grid_spec=pltpu.PrefetchScalarGridSpec(
            num_scalar_prefetch=1,
            grid=(num_tiles,),
            in_specs=[
                pl.BlockSpec((tile_n, c), lambda i, nref: (i, 0)),   # logits: N-tiled
                pl.BlockSpec((tile_n, 1), lambda i, nref: (i, 0)),   # targets: N-tiled
                pl.BlockSpec((1, c), lambda i, nref: (0, 0)),        # alpha: resident
            ],
            out_specs=pl.BlockSpec((8, 128), lambda i, nref: (i, 0)),
        ),
        compiler_params=pltpu.CompilerParams(
            dimension_semantics=("parallel",),        # both TCs on v7x
            vmem_limit_bytes=int(vmem_limit)),
    )(n_valid, inputs, tgt, alpha2d)

    total = jnp.sum(partials[::8, 0])                 # one scalar per tile block
    if reduction == "mean":
        return total / n
    return total


if __name__ == "__main__":
    key = jax.random.PRNGKey(0)
    k1, k2, k3, k4, k5, k6 = jax.random.split(key, 6)

    # Case 1: single-tile (batch=8, classes=32) with per-class alpha, mean reduction.
    N1, C1 = 8, 32
    x1 = jax.random.normal(k1, (N1, C1), dtype=jnp.float32)
    t1 = jax.random.randint(k2, (N1,), 0, C1, dtype=jnp.int32)
    alpha1 = jnp.linspace(0.5, 1.5, C1, dtype=jnp.float32)
    loss1 = multiclass_focal_loss(x1, t1, alpha=alpha1, gamma=2, force_pallas=True)
    jax.block_until_ready(loss1)
    ref1 = jnp.mean(_focal_loss_jax(x1, t1, alpha1, 2))
    assert jnp.allclose(loss1, ref1, rtol=1e-5, atol=1e-6), (loss1, ref1)

    # Case 2: ragged multi-tile grid (N=20, tile 8 -> 3 tiles, last tile 4 valid rows),
    #         alpha=None, float-but-integral gamma (2.0 -> integer path).
    N2, C2 = 20, 32
    x2 = jax.random.normal(k3, (N2, C2), dtype=jnp.float32)
    t2 = jax.random.randint(k4, (N2,), 0, C2, dtype=jnp.int32)
    loss2 = multiclass_focal_loss(x2, t2, alpha=None, gamma=2.0,
                                  force_pallas=True, tile_n=8)
    jax.block_until_ready(loss2)
    ref2 = jnp.mean(_focal_loss_jax(x2, t2, jnp.ones((C2,), jnp.float32), 2))
    assert jnp.allclose(loss2, ref2, rtol=1e-5, atol=1e-6), (loss2, ref2)

    # Case 3: C >= 128 exercises the MXU row-sum path; sum reduction, gamma=3.
    N3, C3 = 24, 256
    x3 = jax.random.normal(k5, (N3, C3), dtype=jnp.float32)
    t3 = jax.random.randint(k6, (N3,), 0, C3, dtype=jnp.int32)
    alpha3 = jnp.linspace(0.25, 2.0, C3, dtype=jnp.float32)
    loss3 = multiclass_focal_loss(x3, t3, alpha=alpha3, gamma=3,
                                  reduction="sum", force_pallas=True, tile_n=8)
    jax.block_until_ready(loss3)
    ref3 = jnp.sum(_focal_loss_jax(x3, t3, alpha3, 3))
    assert jnp.allclose(loss3, ref3, rtol=1e-5, atol=1e-6), (loss3, ref3)

    print("KERNEL_OK")
</pallas_src>

<mosaic_0001>
module attributes {stable_mosaic.version = 11 : i64} {
  func.func @_focal_tile_kernel(%arg0: i32, %arg1: memref<1xi32, #tpu.memory_space<smem>>, %arg2: memref<8x32xf32, #tpu.memory_space<vmem>>, %arg3: memref<8x1xi32, #tpu.memory_space<vmem>>, %arg4: memref<1x32xf32, #tpu.memory_space<vmem>>, %arg5: memref<8x128xf32, #tpu.memory_space<vmem>>) attributes {dimension_semantics = [#tpu.dimension_semantics<parallel>], iteration_bounds = array<i64: 1>, scalar_prefetch = 1 : i64, scratch_operands = 0 : i64, tpu.core_type = #tpu.core_type<tc>, window_params = [{transform_indices = @transform_0, window_bounds = array<i64: 8, 32>}, {transform_indices = @transform_1, window_bounds = array<i64: 8, 1>}, {pipeline_mode = #tpu.pipeline_mode<synchronous>, transform_indices = @transform_2, window_bounds = array<i64: 1, 32>}, {transform_indices = @transform_3, window_bounds = array<i64: 8, 128>}]} {
    %c0 = arith.constant 0 : index
    %c0_0 = arith.constant 0 : index
    %0 = vector.load %arg2[%c0, %c0_0] : memref<8x32xf32, #tpu.memory_space<vmem>>, vector<8x32xf32>
    %c0_1 = arith.constant 0 : index
    %c0_2 = arith.constant 0 : index
    %1 = vector.load %arg3[%c0_1, %c0_2] : memref<8x1xi32, #tpu.memory_space<vmem>>, vector<8x1xi32>
    %c0_3 = arith.constant 0 : index
    %c0_4 = arith.constant 0 : index
    %2 = vector.load %arg4[%c0_3, %c0_4] : memref<1x32xf32, #tpu.memory_space<vmem>>, vector<1x32xf32>
    %3 = tpu.iota {dimensions = array<i32: 1>} : vector<8x32xi32>
    %4 = vector.broadcast %1 : vector<8x1xi32> to vector<8x32xi32>
    %5 = arith.cmpi eq, %3, %4 : vector<8x32xi32>
    %cst = arith.constant dense<0xFF800000> : vector<8xf32>
    %6 = vector.multi_reduction <maximumf>, %0, %cst [1] : vector<8x32xf32> to vector<8xf32>
    %7 = vector.shape_cast %6 : vector<8xf32> to vector<8x1xf32>
    %8 = vector.broadcast %7 : vector<8x1xf32> to vector<8x32xf32>
    %9 = arith.subf %0, %8 : vector<8x32xf32>
    %10 = math.exp %9 : vector<8x32xf32>
    %cst_5 = arith.constant dense<0.000000e+00> : vector<8xf32>
    %11 = vector.multi_reduction <add>, %10, %cst_5 [1] : vector<8x32xf32> to vector<8xf32>
    %12 = vector.shape_cast %11 : vector<8xf32> to vector<8x1xf32>
    %cst_6 = arith.constant 0xFF800000 : f32
    %13 = vector.broadcast %cst_6 : f32 to vector<8x32xf32>
    %14 = arith.select %5, %0, %13 : vector<8x32xi1>, vector<8x32xf32>
    %cst_7 = arith.constant dense<0xFF800000> : vector<8xf32>
    %15 = vector.multi_reduction <maximumf>, %14, %cst_7 [1] : vector<8x32xf32> to vector<8xf32>
    %16 = vector.shape_cast %15 : vector<8xf32> to vector<8x1xf32>
    %cst_8 = arith.constant 0.000000e+00 : f32
    %17 = vector.shape_cast %2 : vector<1x32xf32> to vector<1x32xf32>
    %18 = vector.broadcast %17 : vector<1x32xf32> to vector<8x32xf32>
    %19 = vector.broadcast %cst_8 : f32 to vector<8x32xf32>
    %20 = arith.select %5, %18, %19 : vector<8x32xi1>, vector<8x32xf32>
    %cst_9 = arith.constant dense<0.000000e+00> : vector<8xf32>
    %21 = vector.multi_reduction <add>, %20, %cst_9 [1] : vector<8x32xf32> to vector<8xf32>
    %22 = vector.shape_cast %21 : vector<8xf32> to vector<8x1xf32>
    %23 = arith.subf %7, %16 : vector<8x1xf32>
    %24 = math.log %12 : vector<8x1xf32>
    %25 = arith.addf %23, %24 : vector<8x1xf32>
    %cst_10 = arith.constant 0.000000e+00 : f32
    %26 = vector.broadcast %cst_10 : f32 to vector<8x1xf32>
    %27 = arith.subf %26, %25 : vector<8x1xf32>
    %28 = math.exp %27 : vector<8x1xf32>
    %cst_11 = arith.constant 1.000000e+00 : f32
    %29 = vector.broadcast %cst_11 : f32 to vector<8x1xf32>
    %30 = arith.subf %29, %28 : vector<8x1xf32>
    %cst_12 = arith.constant 0.000000e+00 : f32
    %31 = vector.broadcast %cst_12 : f32 to vector<8x1xf32>
    %32 = arith.maximumf %30, %31 : vector<8x1xf32>
    %33 = arith.mulf %32, %32 : vector<8x1xf32>
    %34 = arith.mulf %22, %33 : vector<8x1xf32>
    %35 = arith.mulf %34, %25 : vector<8x1xf32>
    %c8_i32 = arith.constant 8 : i32
    %36 = arith.muli %arg0, %c8_i32 : i32
    %37 = tpu.iota {dimensions = array<i32: 0>} : vector<8x1xi32>
    %38 = vector.broadcast %36 : i32 to vector<8x1xi32>
    %39 = arith.addi %38, %37 : vector<8x1xi32>
    %c0_13 = arith.constant 0 : index
    %40 = memref.load %arg1[%c0_13] : memref<1xi32, #tpu.memory_space<smem>>
    %41 = vector.broadcast %40 : i32 to vector<8x1xi32>
    %42 = arith.cmpi slt, %39, %41 : vector<8x1xi32>
    %cst_14 = arith.constant 0.000000e+00 : f32
    %43 = vector.broadcast %cst_14 : f32 to vector<8x1xf32>
    %44 = arith.select %42, %35, %43 : vector<8x1xi1>, vector<8x1xf32>
    %45 = vector.shape_cast %44 : vector<8x1xf32> to vector<1x8x1xf32>
    %cst_15 = arith.constant dense<0.000000e+00> : vector<1xf32>
    %46 = vector.multi_reduction <add>, %45, %cst_15 [1, 2] : vector<1x8x1xf32> to vector<1xf32>
    %47 = vector.shape_cast %46 : vector<1xf32> to vector<1x1x1xf32>
    %48 = vector.extract %47[0, 0, 0] : f32 from vector<1x1x1xf32>
    %49 = vector.broadcast %48 : f32 to vector<8x128xf32>
    %c0_16 = arith.constant 0 : index
    %c0_17 = arith.constant 0 : index
    %50 = vector.load %arg5[%c0_16, %c0_17] : memref<8x128xf32, #tpu.memory_space<vmem>>, vector<8x128xf32>
    tpu.vector_store %arg5[%c0_16, %c0_17], %49 {strides = array<i32>} : memref<8x128xf32, #tpu.memory_space<vmem>>, vector<8x128xf32>,
    return
  }
  func.func @transform_0(%arg0: i32, %arg1: memref<1xi32, #tpu.memory_space<smem>>) -> (i32, i32) {
    %c0_i32 = arith.constant 0 : i32
    %c0_i32_0 = arith.constant 0 : i32
    return %arg0, %c0_i32 : i32, i32
  }
  func.func @transform_1(%arg0: i32, %arg1: memref<1xi32, #tpu.memory_space<smem>>) -> (i32, i32) {
    %c0_i32 = arith.constant 0 : i32
    %c0_i32_0 = arith.constant 0 : i32
    return %arg0, %c0_i32 : i32, i32
  }
  func.func @transform_2(%arg0: i32, %arg1: memref<1xi32, #tpu.memory_space<smem>>) -> (i32, i32) {
    %c0_i32 = arith.constant 0 : i32
    %c0_i32_0 = arith.constant 0 : i32
    %c0_i32_1 = arith.constant 0 : i32
    return %c0_i32, %c0_i32_0 : i32, i32
  }
  func.func @transform_3(%arg0: i32, %arg1: memref<1xi32, #tpu.memory_space<smem>>) -> (i32, i32) {
    %c0_i32 = arith.constant 0 : i32
    %c0_i32_0 = arith.constant 0 : i32
    return %arg0, %c0_i32 : i32, i32
  }
}

</mosaic_0001>

<llo_original>
// kernel: tpu_custom_call.1
$region0: #{tpu_custom_call.1}
  #allocation0 [shape = 'u32[]', space=smem, size = 0x4, offset = 0x4, fixed_abs, tag = 'smem constant byte address 0x4 - core index']
  #allocation1 [shape = 'u32[144,128]{1,0:T(1,128)}', space=vmem, size = 0x12000, scoped, tag = 'internal scratch']
  #allocation2 [shape = 's32[1]{0}', space=sflag, size = 0x4, scoped, tag = 'scoped memory for tpu_custom_call.1']
  #allocation3 [shape = 's32[1]{0:T(128)S(6)}', space=smem, size = 0x200, scoped, tag = 'prefetched SMEM operand 0']
  %s0 = inlined_call_operand.<no memory space> [shape: s32[1], index: 0, kind: input, shape index: {}]
  %s1 = inlined_call_operand.vmem [shape: f32[8,32], index: 1, kind: input, shape index: {}]
  %s2 = inlined_call_operand.vmem [shape: s32[8,1], index: 2, kind: input, shape index: {}]
  %s3 = inlined_call_operand.vmem [shape: f32[1,32], index: 3, kind: input, shape index: {}]
  %s4 = inlined_call_operand.hbm [shape: f32[8,128], index: 4, kind: output, shape index: {}]
  %s5 = sld [smem:[#allocation0]]
  $region22: #{tpu_custom_call.1} parent=0
    _
  %s7 = ssub.s32 1, %s5
  %s8 = scalar_select 0, %s7, %s5
  %9 = sst [smem:[#allocation3]] %s0
  $region1: #{tpu_custom_call.1} parent=0
    #allocation4 [shape = 'u8[4096]{0}', space=vmem, size = 0x1000, scoped, tag = 'output window, operand 0, single buffered']
    #allocation5 [shape = 's32[1]{0}', space=sflag, size = 0x4, scoped, tag = 'scoped memory for tpu_custom_call.1']
    %10 = vsyncpa [#allocation5], 0
    // Predicated region
    $region2: #{tpu_custom_call.1} parent=1 // pred_check
      _
    $region3: #{tpu_custom_call.1} parent=1 // pred_check_branch
      %12 = sbr.rel (0) target = $region5
    $region4: #{tpu_custom_call.1} parent=1 // pred_region
      _
    $region5: #{tpu_custom_call.1} parent=1 // pred_fallthru
      _
    // Predicated region
    $region6: #{tpu_custom_call.1} parent=1 // pred_check
      _
    $region7: #{tpu_custom_call.1} parent=1 // pred_check_branch
      %14 = sbr.rel (0) target = $region9
    $region8: #{tpu_custom_call.1} parent=1 // pred_region
      _
    $region9: #{tpu_custom_call.1} parent=1 // pred_fallthru
      _
    // Predicated region
    $region10: #{tpu_custom_call.1} parent=1 // pred_check
      _
    $region11: #{tpu_custom_call.1} parent=1 // pred_check_branch
      %16 = sbr.rel (0) target = $region13
    $region12: #{tpu_custom_call.1} parent=1 // pred_region
      _
    $region13: #{tpu_custom_call.1} parent=1 // pred_fallthru
      _
    %v17 = vld [vmem:[%s1] sm:$0xff]
    %v18 = vld [vmem:[%s2] sm:$0xff]
    %v19 = vld [vmem:[%s3] sm:$0x1]
    %v20 = vlaneseq
    %v21 = vand.u32 %v20, 127
    %22 = vset.pattern.permute.xlu0 0
    %23 = vperm.xlu0 %22, %v18
    %v24 = vpop.permute.xlu0 %23
    %vm25 = vcmp.eq.s32.totalorder %v21, %v24
    %vm26 = vcmask 261120
    %v27 = vsel %vm26, %v17, -inf
    %28 = vmax.xlane.f32.xlu0 %v27
    %v29 = vpop.xlane.xlu0 %28
    %v30 = vsub.f32 %v17, %v29
    %v31 = vmul.f32 %v30, 1.442695
    %v32 = vpow.pop %v31
    %v33 = vsel %vm26, %v32, 0.0
    %34 = vadd.xlane.f32.xlu0 %v33
    %v35 = vpop.xlane.xlu0 %34
    %v36 = vsel %vm25, %v17, -inf
    %v37 = vsel %vm26, %v36, -inf
    %38 = vmax.xlane.f32.xlu0 %v37
    %v39 = vpop.xlane.xlu0 %38
    %v41 = vlaneseq
    %v42 = vshrl.u32 %v41, 7
    %v43 = vsub.s32 0, %v42
    %v44 = vrot.slane %v19, %v43
    %v46 = vsel %vm25, %v44, 0.0
    %v47 = vsel %vm26, %v46, 0.0
    %48 = vadd.xlane.f32.xlu0 %v47
    %v49 = vpop.xlane.xlu0 %48
    %v50 = vsub.f32 %v29, %v39
    %v51 = vlog2.pop %v35
    %v52 = vmul.f32 %v51, 0.6931472
    %v53 = vadd.f32 %v50, %v52
    %v54 = vsub.f32 0.0, %v53
    %v55 = vmul.f32 %v54, 1.442695
    %v56 = vpow.pop %v55
    %v57 = vsub.f32 1.0, %v56
    %v58 = vmax.f32 %v57, 0.0
    %v59 = vmul.f32 %v58, %v58
    %v60 = vmul.f32 %v49, %v59
    %v61 = vmul.f32 %v60, %v53
    %s62 = smul.u32 0, 8
    %v63 = vlaneseq
    %v64 = vshrl.u32 %v63, 7
    %v65 = vstv %s62
    %v66 = vadd.s32 %v65, %v64
    %s67 = sld [smem:[#allocation3]]
    %v68 = vstv %s67
    %vm69 = vcmp.lt.s32.totalorder %v66, %v68
    %v70 = vsel %vm69, %v61, 0.0
    %vm71 = vcmask 7168
    %v72 = vsel %vm71, %v70, 0.0
    %73 = vadd.xlane.f32.xlu0 %v72
    %v74 = vpop.xlane.xlu0 %73
    %v75 = vrot.slane %v74, 4
    %v76 = vadd.f32 %v74, %v75
    %v77 = vrot.slane %v76, 2
    %v78 = vadd.f32 %v76, %v77
    %v79 = vrot.slane %v78, 1
    %v80 = vadd.f32 %v78, %v79
    %s81 = vtos %v80
    %v82 = vstv %s81
    %83 = vst [vmem:[#allocation4] sm:$0xff] %v82
    // Predicated region
    $region14: #{tpu_custom_call.1} parent=1 // pred_check
      _
    $region15: #{tpu_custom_call.1} parent=1 // pred_check_branch
      %85 = sbr.rel (0) target = $region17
    $region16: #{tpu_custom_call.1} parent=1 // pred_region
      %s87 = ssub.s32 128, 128
      %88 = vsyncadd [#allocation5], %s87
      %s90 = sshll.u32 [#allocation4], 4
      %s91 = int_to_ptr.vmem [resolvable:$true] %s90
      %93 = dma.vmem_to_hbm [thread:$0]  %s91, 128, %s4, [#allocation5]
    $region17: #{tpu_custom_call.1} parent=1 // pred_fallthru
      _
    // Predicated region
    $region18: #{tpu_custom_call.1} parent=1 // pred_check
      _
    $region19: #{tpu_custom_call.1} parent=1 // pred_check_branch
      %95 = sbr.rel (0) target = $region21
    $region20: #{tpu_custom_call.1} parent=1 // pred_region
      %96 = dma.done [#allocation5], 128
    $region21: #{tpu_custom_call.1} parent=1 // pred_fallthru
      _
    %97 = vsyncpa [#allocation5], 1

</llo_original>
